<compile_context>
chip_gen: v6e
topology: v6e:2x2x1
jax: 0.10.0
libtpu: 0.0.40
codegen_flags: <defaults>
</compile_context>

<pallas_src>
import functools

import jax
import jax.numpy as jnp
from jax.experimental import pallas as pl
from jax.experimental.pallas import tpu as pltpu


def _tpsnr_sum_kernel(a_ref, b_ref, t1_ref, t2_ref, out_ref, *,
                      rows, tile_rows, steps_per_chunk, acc_rows, needs_mask):
    c = pl.program_id(0)   # chunk axis ("parallel": megacore sharding on v7x)
    i = pl.program_id(1)   # reduction axis over row tiles ("arbitrary")

    # The per-chunk output block (1, acc_rows, 128) keeps the same block index for
    # every i, so it stays resident in VMEM across the reduction -> use it directly
    # as the accumulator (no scratch needed).
    @pl.when(i == 0)
    def _():
        out_ref[...] = jnp.zeros_like(out_ref)

    # Elementwise hot path, VPU only: in-kernel upcast, (img1-img2)-(target1-target2).
    diff = (a_ref[...].astype(jnp.float32) - b_ref[...].astype(jnp.float32)) - (
        t1_ref[...].astype(jnp.float32) - t2_ref[...].astype(jnp.float32))
    lanes = diff.shape[-1]

    def accumulate(d):
        sq = d * d
        if acc_rows == 8:
            # (tile_rows, 128) -> (tile_rows//8, 8, 128) splits the sublane-major dim
            # on a multiple of 8: tile-preserving (free).  axis-0 reduce = vreg adds.
            part = jnp.sum(sq.reshape(tile_rows // 8, 8, lanes), axis=0)
        else:
            # Tiny-input fallback (tile_rows == rows, not a multiple of 8).
            part = jnp.sum(sq, axis=0, keepdims=True)
        out_ref[...] += part.reshape(1, acc_rows, lanes)

    if not needs_mask:
        # Steady state: tiles divide the rows exactly and there are no idle clamped
        # steps -> no iota / select work at all.
        accumulate(diff)
    else:
        # NOTE: row_start uses the UNCLAMPED step index while the index_map clamps;
        # the mask is what zeroes the clamped idle steps — keep the two in sync.
        row_start = (c * steps_per_chunk + i) * tile_rows
        is_interior = row_start + tile_rows <= rows

        @pl.when(is_interior)
        def _():
            accumulate(diff)

        @pl.when(jnp.logical_not(is_interior))
        def _():
            local_row = jax.lax.broadcasted_iota(jnp.int32, diff.shape, 0)
            accumulate(jnp.where(local_row < (rows - row_start), diff, 0.0))


def tpsnr(img1, img2, target1, target2, *, tile_rows=4096, num_chunks=2, lanes=128):
    assert img1.shape == img2.shape == target1.shape == target2.shape
    total = int(img1.size)
    assert total > 0

    def prep(x):
        # Keep native dtype (upcast happens in-kernel); reshaping a contiguous array
        # to (rows, 128) is free — no HBM copies on the common path.
        x = x.reshape(-1)
        rem = (-x.shape[0]) % lanes
        if rem:
            # TODO(synk): rare path (total % 128 != 0) materializes one padded copy per
            # input; the zero padding contributes exactly 0 to the sum, so it only
            # costs the extra HBM traffic, not correctness.
            x = jnp.pad(x, (0, rem))
        return x.reshape(-1, lanes)

    a, b, t1, t2 = prep(img1), prep(img2), prep(target1), prep(target2)
    rows = a.shape[0]

    # Row-tile size: must be a multiple of 8 or equal to the full row extent.
    tile_rows = min(tile_rows, rows)
    if tile_rows != rows and tile_rows % 8:
        tile_rows = max(8, tile_rows - tile_rows % 8)

    total_steps = -(-rows // tile_rows)
    num_chunks = max(1, min(num_chunks, total_steps))
    steps_per_chunk = -(-total_steps // num_chunks)

    has_idle = steps_per_chunk * num_chunks > total_steps
    has_overhang = (rows % tile_rows) != 0
    needs_mask = bool(has_idle or has_overhang)

    acc_rows = 8 if tile_rows % 8 == 0 else 1

    def in_map(c, i):
        # Clamp so idle trailing steps of the last chunk never index out of bounds;
        # their contribution is zeroed by the in-kernel row mask (needs_mask is True
        # whenever such steps exist).
        return (jnp.minimum(c * steps_per_chunk + i, total_steps - 1), 0)

    in_spec = pl.BlockSpec((tile_rows, lanes), in_map)

    # VMEM budget: 4 inputs x 2 pipeline buffers x tile (+ slack for the tiny output).
    # Raise the scoped limit explicitly (v5e default is 16 MiB) but cap at 48 MiB so
    # it keeps headroom on v7x's 64 MiB per-TC VMEM.
    tile_in_bytes = sum(2 * tile_rows * lanes * x.dtype.itemsize for x in (a, b, t1, t2))
    vmem_limit = int(min(48 << 20, max(32 << 20, tile_in_bytes + (8 << 20))))

    partials = pl.pallas_call(
        functools.partial(
            _tpsnr_sum_kernel,
            rows=rows, tile_rows=tile_rows, steps_per_chunk=steps_per_chunk,
            acc_rows=acc_rows, needs_mask=needs_mask),
        out_shape=jax.ShapeDtypeStruct((num_chunks, acc_rows, lanes), jnp.float32),
        grid_spec=pltpu.PrefetchScalarGridSpec(
            num_scalar_prefetch=0,
            grid=(num_chunks, steps_per_chunk),
            in_specs=[in_spec, in_spec, in_spec, in_spec],
            out_specs=pl.BlockSpec((1, acc_rows, lanes), lambda c, i: (c, 0, 0)),
        ),
        compiler_params=pltpu.CompilerParams(
            dimension_semantics=("parallel", "arbitrary"),
            vmem_limit_bytes=vmem_limit,
        ),
    )(a, b, t1, t2)

    # Tiny epilogue: combine per-chunk, per-lane partial sums; divide by the TRUE
    # element count (any zero padding contributed exactly 0 to the sum).
    mse = jnp.sum(partials) / jnp.float32(total)
    return -10.0 * jnp.log10(mse)   # == 20*log10(1/sqrt(mse))


def tpsnr_ref(img1, img2, target1, target2):
    diff = (img1 - img2) - (target1 - target2)
    mse = jnp.mean(diff * diff)
    return 20.0 * jnp.log10(1.0 / jnp.sqrt(mse))


if __name__ == "__main__":
    key = jax.random.PRNGKey(0)

    def make(shape, k):
        k1, k2, k3, k4 = jax.random.split(k, 4)
        return (jax.random.uniform(k1, shape, jnp.float32),
                jax.random.uniform(k2, shape, jnp.float32),
                jax.random.uniform(k3, shape, jnp.float32),
                jax.random.uniform(k4, shape, jnp.float32))

    k_a, k_b, k_c = jax.random.split(key, 3)

    # 1) Main small NCHW case (like the PyTorch module): clean 128-multiple path.
    args = make((2, 4, 16, 16), k_a)
    out = jax.block_until_ready(tpsnr(*args))
    ref = jax.block_until_ready(tpsnr_ref(*args))
    assert jnp.allclose(out, ref, rtol=1e-4, atol=1e-4), (out, ref)

    # 2) Ragged total (315 elements): exercises the lane-padding path.
    args = make((3, 3, 7, 5), k_b)
    out = jax.block_until_ready(tpsnr(*args))
    ref = jax.block_until_ready(tpsnr_ref(*args))
    assert jnp.allclose(out, ref, rtol=1e-4, atol=1e-4), (out, ref)

    # 3) Multi-chunk + overhanging last row tile: exercises the gated mask path.
    args = make((2, 4, 24, 16), k_c)
    out = jax.block_until_ready(tpsnr(*args, tile_rows=16, num_chunks=2))
    ref = jax.block_until_ready(tpsnr_ref(*args))
    assert jnp.allclose(out, ref, rtol=1e-4, atol=1e-4), (out, ref)

    print("KERNEL_OK")
</pallas_src>

<mosaic_0001>
module attributes {stable_mosaic.version = 11 : i64} {
  func.func @_tpsnr_sum_kernel(%arg0: i32, %arg1: i32, %arg2: memref<16x128xf32, #tpu.memory_space<vmem>>, %arg3: memref<16x128xf32, #tpu.memory_space<vmem>>, %arg4: memref<16x128xf32, #tpu.memory_space<vmem>>, %arg5: memref<16x128xf32, #tpu.memory_space<vmem>>, %arg6: memref<1x8x128xf32, #tpu.memory_space<vmem>>) attributes {dimension_semantics = [#tpu.dimension_semantics<parallel>, #tpu.dimension_semantics<arbitrary>], iteration_bounds = array<i64: 1, 1>, scalar_prefetch = 0 : i64, scratch_operands = 0 : i64, tpu.core_type = #tpu.core_type<tc>, window_params = [{transform_indices = @transform_0, window_bounds = array<i64: 16, 128>}, {transform_indices = @transform_1, window_bounds = array<i64: 16, 128>}, {transform_indices = @transform_2, window_bounds = array<i64: 16, 128>}, {transform_indices = @transform_3, window_bounds = array<i64: 16, 128>}, {transform_indices = @transform_4, window_bounds = array<i64: 1, 8, 128>}]} {
    %c0_i32 = arith.constant 0 : i32
    %0 = arith.cmpi eq, %arg1, %c0_i32 : i32
    %1 = arith.extui %0 : i1 to i32
    %c0_i32_0 = arith.constant 0 : i32
    %2 = arith.cmpi ne, %1, %c0_i32_0 : i32
    scf.if %2 {
      %cst_14 = arith.constant 0.000000e+00 : f32
      %17 = vector.broadcast %cst_14 : f32 to vector<1x8x128xf32>
      %c0_15 = arith.constant 0 : index
      %c0_16 = arith.constant 0 : index
      %c0_17 = arith.constant 0 : index
      %18 = vector.load %arg6[%c0_15, %c0_16, %c0_17] : memref<1x8x128xf32, #tpu.memory_space<vmem>>, vector<1x8x128xf32>
      tpu.vector_store %arg6[%c0_15, %c0_16, %c0_17], %17 {strides = array<i32>} : memref<1x8x128xf32, #tpu.memory_space<vmem>>, vector<1x8x128xf32>,
    } else {
    }
    %c0 = arith.constant 0 : index
    %c0_1 = arith.constant 0 : index
    %3 = vector.load %arg2[%c0, %c0_1] : memref<16x128xf32, #tpu.memory_space<vmem>>, vector<16x128xf32>
    %c0_2 = arith.constant 0 : index
    %c0_3 = arith.constant 0 : index
    %4 = vector.load %arg3[%c0_2, %c0_3] : memref<16x128xf32, #tpu.memory_space<vmem>>, vector<16x128xf32>
    %5 = arith.subf %3, %4 : vector<16x128xf32>
    %c0_4 = arith.constant 0 : index
    %c0_5 = arith.constant 0 : index
    %6 = vector.load %arg4[%c0_4, %c0_5] : memref<16x128xf32, #tpu.memory_space<vmem>>, vector<16x128xf32>
    %c0_6 = arith.constant 0 : index
    %c0_7 = arith.constant 0 : index
    %7 = vector.load %arg5[%c0_6, %c0_7] : memref<16x128xf32, #tpu.memory_space<vmem>>, vector<16x128xf32>
    %8 = arith.subf %6, %7 : vector<16x128xf32>
    %9 = arith.subf %5, %8 : vector<16x128xf32>
    %10 = arith.mulf %9, %9 : vector<16x128xf32>
    %11 = vector.shape_cast %10 : vector<16x128xf32> to vector<2x8x128xf32>
    %cst = arith.constant dense<0.000000e+00> : vector<8x128xf32>
    %12 = vector.multi_reduction <add>, %11, %cst [0] : vector<2x8x128xf32> to vector<8x128xf32>
    %c0_8 = arith.constant 0 : index
    %c0_9 = arith.constant 0 : index
    %c0_10 = arith.constant 0 : index
    %13 = vector.load %arg6[%c0_8, %c0_9, %c0_10] : memref<1x8x128xf32, #tpu.memory_space<vmem>>, vector<1x8x128xf32>
    %14 = vector.shape_cast %12 : vector<8x128xf32> to vector<1x8x128xf32>
    %15 = arith.addf %13, %14 : vector<1x8x128xf32>
    %c0_11 = arith.constant 0 : index
    %c0_12 = arith.constant 0 : index
    %c0_13 = arith.constant 0 : index
    %16 = vector.load %arg6[%c0_11, %c0_12, %c0_13] : memref<1x8x128xf32, #tpu.memory_space<vmem>>, vector<1x8x128xf32>
    tpu.vector_store %arg6[%c0_11, %c0_12, %c0_13], %15 {strides = array<i32>} : memref<1x8x128xf32, #tpu.memory_space<vmem>>, vector<1x8x128xf32>,
    return
  }
  func.func @transform_0(%arg0: i32, %arg1: i32) -> (i32, i32) {
    %c1_i32 = arith.constant 1 : i32
    %0 = arith.muli %arg0, %c1_i32 : i32
    %1 = arith.addi %0, %arg1 : i32
    %c0_i32 = arith.constant 0 : i32
    %2 = arith.minsi %1, %c0_i32 : i32
    %c0_i32_0 = arith.constant 0 : i32
    %c0_i32_1 = arith.constant 0 : i32
    return %2, %c0_i32_0 : i32, i32
  }
  func.func @transform_1(%arg0: i32, %arg1: i32) -> (i32, i32) {
    %c1_i32 = arith.constant 1 : i32
    %0 = arith.muli %arg0, %c1_i32 : i32
    %1 = arith.addi %0, %arg1 : i32
    %c0_i32 = arith.constant 0 : i32
    %2 = arith.minsi %1, %c0_i32 : i32
    %c0_i32_0 = arith.constant 0 : i32
    %c0_i32_1 = arith.constant 0 : i32
    return %2, %c0_i32_0 : i32, i32
  }
  func.func @transform_2(%arg0: i32, %arg1: i32) -> (i32, i32) {
    %c1_i32 = arith.constant 1 : i32
    %0 = arith.muli %arg0, %c1_i32 : i32
    %1 = arith.addi %0, %arg1 : i32
    %c0_i32 = arith.constant 0 : i32
    %2 = arith.minsi %1, %c0_i32 : i32
    %c0_i32_0 = arith.constant 0 : i32
    %c0_i32_1 = arith.constant 0 : i32
    return %2, %c0_i32_0 : i32, i32
  }
  func.func @transform_3(%arg0: i32, %arg1: i32) -> (i32, i32) {
    %c1_i32 = arith.constant 1 : i32
    %0 = arith.muli %arg0, %c1_i32 : i32
    %1 = arith.addi %0, %arg1 : i32
    %c0_i32 = arith.constant 0 : i32
    %2 = arith.minsi %1, %c0_i32 : i32
    %c0_i32_0 = arith.constant 0 : i32
    %c0_i32_1 = arith.constant 0 : i32
    return %2, %c0_i32_0 : i32, i32
  }
  func.func @transform_4(%arg0: i32, %arg1: i32) -> (i32, i32, i32) {
    %c0_i32 = arith.constant 0 : i32
    %c0_i32_0 = arith.constant 0 : i32
    %c0_i32_1 = arith.constant 0 : i32
    return %arg0, %c0_i32, %c0_i32_0 : i32, i32, i32
  }
}

</mosaic_0001>

<llo_original>
// kernel: tpu_custom_call.1
$region0: #{tpu_custom_call.1}
  #allocation0 [shape = 'u32[]', space=smem, size = 0x4, offset = 0x4, fixed_abs, tag = 'smem constant byte address 0x4 - core index']
  #allocation1 [shape = 'u32[144,128]{1,0:T(1,128)}', space=vmem, size = 0x12000, scoped, tag = 'internal scratch']
  %s0 = inlined_call_operand.hbm [shape: f32[16,128], index: 0, kind: input, shape index: {}]
  %s1 = inlined_call_operand.hbm [shape: f32[16,128], index: 1, kind: input, shape index: {}]
  %s2 = inlined_call_operand.hbm [shape: f32[16,128], index: 2, kind: input, shape index: {}]
  %s3 = inlined_call_operand.hbm [shape: f32[16,128], index: 3, kind: input, shape index: {}]
  %s4 = inlined_call_operand.hbm [shape: f32[1,8,128], index: 4, kind: output, shape index: {}]
  %s5 = sld [smem:[#allocation0]]
  $region46: #{tpu_custom_call.1} parent=0
    _
  %s7 = ssub.s32 1, %s5
  %s8 = scalar_select 0, %s7, %s5
  $region1: #{tpu_custom_call.1} parent=0
    #allocation2 [shape = 'u8[8192]{0}', space=vmem, size = 0x2000, scoped, tag = 'input window, operand 0, single buffered']
    #allocation3 [shape = 's32[1]{0}', space=sflag, size = 0x4, scoped, tag = 'scoped memory for tpu_custom_call.1']
    #allocation4 [shape = 's32[1]{0}', space=sflag, size = 0x4, scoped, tag = 'scoped memory for tpu_custom_call.1']
    #allocation5 [shape = 'u8[8192]{0}', space=vmem, size = 0x2000, scoped, tag = 'input window, operand 1, single buffered']
    #allocation6 [shape = 's32[1]{0}', space=sflag, size = 0x4, scoped, tag = 'scoped memory for tpu_custom_call.1']
    #allocation7 [shape = 'u8[8192]{0}', space=vmem, size = 0x2000, scoped, tag = 'input window, operand 2, single buffered']
    #allocation8 [shape = 'u8[8192]{0}', space=vmem, size = 0x2000, scoped, tag = 'input window, operand 3, single buffered']
    #allocation9 [shape = 's32[1]{0}', space=sflag, size = 0x4, scoped, tag = 'scoped memory for tpu_custom_call.1']
    #allocation10 [shape = 'u8[4096]{0}', space=vmem, size = 0x1000, scoped, tag = 'output window, operand 0, single buffered']
    %9 = vsyncpa [#allocation3], 0
    %10 = vsyncpa [#allocation6], 0
    %11 = vsyncpa [#allocation9], 0
    %12 = vsyncpa [#allocation4], 0
    // Predicated region
    $region2: #{tpu_custom_call.1} parent=1 // pred_check
      _
    $region3: #{tpu_custom_call.1} parent=1 // pred_check_branch
      %14 = sbr.rel (0) target = $region5
    $region4: #{tpu_custom_call.1} parent=1 // pred_region
      %s15 = sadd.s32 0, 0
      %p16 = scmp.lt.s32.totalorder %s15, 0
      %s17 = scalar_select %p16, %s15, 0
      %s18 = smul.u32 2, %s17
      %s20 = ssub.s32 256, 256
      %21 = vsyncadd [#allocation3], %s20
      %s22 = smul.addr %s18, 128
      %s23 = scalar_lea.hbm %s0, %s22
      %s24 = sshll.u32 [#allocation2], 4
      %s25 = int_to_ptr.vmem [resolvable:$true] %s24
      %30 = dma.hbm_to_vmem [thread:$0]  %s23, 256, %s25, [#allocation3], 128, 128, 8
    $region5: #{tpu_custom_call.1} parent=1 // pred_fallthru
      _
    // Predicated region
    $region6: #{tpu_custom_call.1} parent=1 // pred_check
      _
    $region7: #{tpu_custom_call.1} parent=1 // pred_check_branch
      %32 = sbr.rel (0) target = $region9
    $region8: #{tpu_custom_call.1} parent=1 // pred_region
      %s33 = sadd.s32 0, 0
      %p34 = scmp.lt.s32.totalorder %s33, 0
      %s35 = scalar_select %p34, %s33, 0
      %s36 = smul.u32 2, %s35
      %s38 = ssub.s32 256, 256
      %39 = vsyncadd [#allocation6], %s38
      %s40 = smul.addr %s36, 128
      %s41 = scalar_lea.hbm %s1, %s40
      %s42 = sshll.u32 [#allocation5], 4
      %s43 = int_to_ptr.vmem [resolvable:$true] %s42
      %48 = dma.hbm_to_vmem [thread:$0]  %s41, 256, %s43, [#allocation6], 128, 128, 8
    $region9: #{tpu_custom_call.1} parent=1 // pred_fallthru
      _
    // Predicated region
    $region10: #{tpu_custom_call.1} parent=1 // pred_check
      _
    $region11: #{tpu_custom_call.1} parent=1 // pred_check_branch
      %50 = sbr.rel (0) target = $region13
    $region12: #{tpu_custom_call.1} parent=1 // pred_region
      %s51 = sadd.s32 0, 0
      %p52 = scmp.lt.s32.totalorder %s51, 0
      %s53 = scalar_select %p52, %s51, 0
      %s54 = smul.u32 2, %s53
      %s56 = ssub.s32 256, 256
      %57 = vsyncadd [#allocation6], %s56
      %s58 = smul.addr %s54, 128
      %s59 = scalar_lea.hbm %s2, %s58
      %s60 = sshll.u32 [#allocation7], 4
      %s61 = int_to_ptr.vmem [resolvable:$true] %s60
      %66 = dma.hbm_to_vmem [thread:$0]  %s59, 256, %s61, [#allocation6], 128, 128, 8
    $region13: #{tpu_custom_call.1} parent=1 // pred_fallthru
      _
    // Predicated region
    $region14: #{tpu_custom_call.1} parent=1 // pred_check
      _
    $region15: #{tpu_custom_call.1} parent=1 // pred_check_branch
      %68 = sbr.rel (0) target = $region17
    $region16: #{tpu_custom_call.1} parent=1 // pred_region
      %s69 = sadd.s32 0, 0
      %p70 = scmp.lt.s32.totalorder %s69, 0
      %s71 = scalar_select %p70, %s69, 0
      %s72 = smul.u32 2, %s71
      %s74 = ssub.s32 256, 256
      %75 = vsyncadd [#allocation9], %s74
      %s76 = smul.addr %s72, 128
      %s77 = scalar_lea.hbm %s3, %s76
      %s78 = sshll.u32 [#allocation8], 4
      %s79 = int_to_ptr.vmem [resolvable:$true] %s78
      %84 = dma.hbm_to_vmem [thread:$0]  %s77, 256, %s79, [#allocation9], 128, 128, 8
    $region17: #{tpu_custom_call.1} parent=1 // pred_fallthru
      _
    // Predicated region
    $region18: #{tpu_custom_call.1} parent=1 // pred_check
      _
    $region19: #{tpu_custom_call.1} parent=1 // pred_check_branch
      %86 = sbr.rel (0) target = $region21
    $region20: #{tpu_custom_call.1} parent=1 // pred_region
      %87 = dma.done [#allocation3], 256
    $region21: #{tpu_custom_call.1} parent=1 // pred_fallthru
      _
    // Predicated region
    $region22: #{tpu_custom_call.1} parent=1 // pred_check
      _
    $region23: #{tpu_custom_call.1} parent=1 // pred_check_branch
      %89 = sbr.rel (0) target = $region25
    $region24: #{tpu_custom_call.1} parent=1 // pred_region
      %90 = dma.done [#allocation6], 256
    $region25: #{tpu_custom_call.1} parent=1 // pred_fallthru
      _
    // Predicated region
    $region26: #{tpu_custom_call.1} parent=1 // pred_check
      _
    $region27: #{tpu_custom_call.1} parent=1 // pred_check_branch
      %92 = sbr.rel (0) target = $region29
    $region28: #{tpu_custom_call.1} parent=1 // pred_region
      %93 = dma.done [#allocation6], 256
    $region29: #{tpu_custom_call.1} parent=1 // pred_fallthru
      _
    // Predicated region
    $region30: #{tpu_custom_call.1} parent=1 // pred_check
      _
    $region31: #{tpu_custom_call.1} parent=1 // pred_check_branch
      %95 = sbr.rel (0) target = $region33
    $region32: #{tpu_custom_call.1} parent=1 // pred_region
      %96 = dma.done [#allocation9], 256
    $region33: #{tpu_custom_call.1} parent=1 // pred_fallthru
      _
    %s97 = sadd.s32 0, 0
    %p98 = scmp.lt.s32.totalorder %s97, 0
    %s99 = scalar_select %p98, %s97, 0
    %s100 = smul.u32 2, %s99
    %s101 = sadd.s32 0, 0
    %p102 = scmp.lt.s32.totalorder %s101, 0
    %s103 = scalar_select %p102, %s101, 0
    %s104 = smul.u32 2, %s103
    %s105 = sadd.s32 0, 0
    %p106 = scmp.lt.s32.totalorder %s105, 0
    %s107 = scalar_select %p106, %s105, 0
    %s108 = smul.u32 2, %s107
    %s109 = sadd.s32 0, 0
    %p110 = scmp.lt.s32.totalorder %s109, 0
    %s111 = scalar_select %p110, %s109, 0
    %s112 = smul.u32 2, %s111
    %p113 = scmp.eq.s32.totalorder 0, 0
    // Predicated region
    $region34: #{tpu_custom_call.1} parent=1 // pred_check
      %p114 = pneg %p113
    $region35: #{tpu_custom_call.1} parent=1 // pred_check_branch
      %116 = sbr.rel (%p114) target = $region37
    $region36: #{tpu_custom_call.1} parent=1 // pred_region
      %117 = vst [vmem:[#allocation10] sm:$0xff] 0.0
    $region37: #{tpu_custom_call.1} parent=1 // pred_fallthru
      _
    %v118 = vld [vmem:[#allocation2] sm:$0xff]
    %v119 = vld [vmem:[#allocation2 + $0x8] sm:$0xff]
    %v120 = vld [vmem:[#allocation5] sm:$0xff]
    %v121 = vld [vmem:[#allocation5 + $0x8] sm:$0xff]
    %v122 = vsub.f32 %v118, %v120
    %v123 = vsub.f32 %v119, %v121
    %v124 = vld [vmem:[#allocation7] sm:$0xff]
    %v125 = vld [vmem:[#allocation7 + $0x8] sm:$0xff]
    %v126 = vld [vmem:[#allocation8] sm:$0xff]
    %v127 = vld [vmem:[#allocation8 + $0x8] sm:$0xff]
    %v128 = vsub.f32 %v124, %v126
    %v129 = vsub.f32 %v125, %v127
    %v130 = vsub.f32 %v122, %v128
    %v131 = vsub.f32 %v123, %v129
    %v132 = vmul.f32 %v130, %v130
    %v133 = vmul.f32 %v131, %v131
    %v134 = vadd.f32 %v132, %v133
    %v135 = vld [vmem:[#allocation10] sm:$0xff]
    %v136 = vadd.f32 %v135, %v134
    %137 = vst [vmem:[#allocation10] sm:$0xff] %v136
    // Predicated region
    $region38: #{tpu_custom_call.1} parent=1 // pred_check
      _
    $region39: #{tpu_custom_call.1} parent=1 // pred_check_branch
      %139 = sbr.rel (0) target = $region41
    $region40: #{tpu_custom_call.1} parent=1 // pred_region
      %s141 = ssub.s32 128, 128
      %142 = vsyncadd [#allocation4], %s141
      %s144 = sshll.u32 [#allocation10], 4
      %s145 = int_to_ptr.vmem [resolvable:$true] %s144
      %147 = dma.vmem_to_hbm [thread:$0]  %s145, 128, %s4, [#allocation4]
    $region41: #{tpu_custom_call.1} parent=1 // pred_fallthru
      _
    // Predicated region
    $region42: #{tpu_custom_call.1} parent=1 // pred_check
      _
    $region43: #{tpu_custom_call.1} parent=1 // pred_check_branch
      %149 = sbr.rel (0) target = $region45
    $region44: #{tpu_custom_call.1} parent=1 // pred_region
      %150 = dma.done [#allocation4], 128
    $region45: #{tpu_custom_call.1} parent=1 // pred_fallthru
      _
    %151 = vsyncpa [#allocation3], 1
    %152 = vsyncpa [#allocation6], 1
    %153 = vsyncpa [#allocation9], 1
    %154 = vsyncpa [#allocation4], 1

</llo_original>
